<compile_context>
chip_gen: v7x
topology: tpu7x:2x2x1
jax: 0.10.0
libtpu: 0.0.40
codegen_flags: <defaults>
</compile_context>

<pallas_src>
from functools import partial

import jax
import jax.numpy as jnp
from jax import lax
from jax.experimental import pallas as pl
from jax.experimental.pallas import tpu as pltpu


def _round_up(v, m):
    return (v + m - 1) // m * m


def _ltm_kernel(x_ref, memT_ref, outT_ref, accT_ref, csum_ref, memsq_ref, *rest,
                learn_rate, total_tokens, token_tile, mask_tokens, cast_mem,
                mm_dtype):
    """Grid = (M blocks, token tiles); token axis is the inner reduction.

    x_ref    : (Tb, Dp)   streamed token tile                          VMEM
    memT_ref : (Dp, Mt)   transposed memory block (resident per mi)    VMEM
    outT_ref : (Dp, Mt)   transposed updated memory block              VMEM
    accT_ref : (Dp, Mt)   f32 accumulator for x^T @ S                  VMEM scratch
    csum_ref : (1,  Mt)   f32 accumulator for colsum(S)                VMEM scratch
    memsq_ref: (1,  Mt)   f32 ||mem_m||^2, computed at ti == 0         VMEM scratch
    rest     : optional (Dp, Mt) mm_dtype copy of memT (cast hoisted to ti==0)
    """
    ti = pl.program_id(1)
    memT = memT_ref[...]                                    # (Dp, Mt), native dtype

    @pl.when(ti == 0)
    def _init():
        mf = memT.astype(jnp.float32)
        memsq_ref[...] = jnp.sum(mf * mf, axis=0, keepdims=True)      # (1, Mt)
        accT_ref[...] = jnp.zeros_like(accT_ref)
        csum_ref[...] = jnp.zeros_like(csum_ref)
        if cast_mem:   # hoist the dtype cast: once per M block, not per step
            rest[0][...] = memT.astype(rest[0].dtype)

    x = x_ref[...]                                                    # (Tb, Dp)
    if mask_tokens:
        # Ragged last token block: the out-of-bounds rows of the x block are
        # unspecified (possibly NaN/Inf), so zero them BEFORE any matmul
        # (0 * NaN = NaN would otherwise pollute accT).
        tok = lax.broadcasted_iota(jnp.int32, (x.shape[0], 1), 0) + ti * token_tile
        valid = tok < total_tokens                                    # (Tb, 1)
        x = jnp.where(valid, x, 0)

    xf = x.astype(jnp.float32)
    x_mm = x if x.dtype == mm_dtype else x.astype(mm_dtype)
    mem_mm = rest[0][...] if cast_mem else memT

    # Gram tile on the MXU: g[t, m] = <x_t, mem_m>
    g = lax.dot_general(x_mm, mem_mm, (((1,), (0,)), ((), ())),
                        preferred_element_type=jnp.float32)           # (Tb, Mt)
    xsq = jnp.sum(xf * xf, axis=1, keepdims=True)                     # (Tb, 1)
    # clamp: rounding can push the squared distance slightly negative near x==mem
    s = jnp.sqrt(jnp.maximum(xsq + memsq_ref[...] - 2.0 * g, 0.0))    # (Tb, Mt)
    if mask_tokens:
        s = jnp.where(valid, s, 0.0)          # padded tokens contribute nothing

    # accT += x^T @ S  (contract the token axis; both contractions on the MXU).
    # TODO(synk): verify in the Mosaic bundle dump that this dim-0/dim-0
    #             contraction does not materialize a per-step XLU transpose of
    #             the (Tb, Dp) x block; if it does, transpose the small S tile
    #             instead and keep the accumulator in (Mt, Dp) layout.
    accT_ref[...] += lax.dot_general(x_mm, s.astype(mm_dtype),
                                     (((0,), (0,)), ((), ())),
                                     preferred_element_type=jnp.float32)  # (Dp, Mt)
    csum_ref[...] += jnp.sum(s, axis=0, keepdims=True)                    # (1, Mt)

    @pl.when(ti == pl.num_programs(1) - 1)
    def _finalize():
        mf = memT.astype(jnp.float32)
        scale = learn_rate / total_tokens                   # lr / (B*S), Python const
        outT_ref[...] = (mf + scale * (accT_ref[...] - csum_ref[...] * mf)
                         ).astype(outT_ref.dtype)


def long_term_memory_forward(x, memory, learn_rate=0.1, *, token_tile=None,
                             target_block_bytes=1 << 20, matmul_dtype=None):
    """x: [B, S, D], memory: [M, D] -> updated memory [M, D].

    matmul_dtype: set to jnp.bfloat16 to run the two MXU contractions at bf16
    (4-8x MXU rate on v5e/v6e/v7x) when the kernel is compute bound; the
    surprise / accumulator math stays f32.  Default: x.dtype.
    """
    B, S, D = x.shape
    M, D2 = memory.shape
    assert D == D2
    T = B * S

    x_item = jnp.dtype(x.dtype).itemsize
    mem_item = jnp.dtype(memory.dtype).itemsize
    mm_dtype = jnp.dtype(matmul_dtype) if matmul_dtype is not None else jnp.dtype(x.dtype)
    cast_mem = jnp.dtype(memory.dtype) != mm_dtype

    Dp = _round_up(D, 128)                    # lane-dense feature axis
    Mp = _round_up(M, 128)                    # lane-dense memory-slot axis
    # M block (lane) width: full Mp up to 512, else 256/128, so the resident
    # (Dp, Mt) accumulator + memory blocks stay modest and large-M problems get
    # a >1 "parallel" leading grid axis (second TensorCore on v7x).
    if Mp <= 512:
        m_tile = Mp
    elif Mp % 256 == 0:
        m_tile = 256
    else:
        m_tile = 128

    # Token tile: target ~target_block_bytes per streamed x block, capped by a
    # conservative VMEM budget (double-buffered x + memT/outT buffers + f32 acc
    # must fit well under v7x's 64 MiB VMEM; v5e/v6e have 128 MiB headroom).
    sub = max(8, 32 // x_item)                # sublane packing (8 f32 / 16 bf16)
    fixed_vmem = Dp * m_tile * (4 * mem_item + 4) + 64 * 1024
    budget = 40 * 1024 * 1024
    if token_tile is None:
        tile = max(sub, target_block_bytes // (Dp * x_item) // sub * sub)
    else:
        tile = _round_up(int(token_tile), sub)
    max_tile = max(sub, (budget - fixed_vmem) // (3 * Dp * x_item) // sub * sub)
    tile = min(tile, max_tile, _round_up(T, sub))

    grid_t = pl.cdiv(T, tile)
    grid_m = Mp // m_tile
    mask_tokens = grid_t * tile != T

    # Stream x straight from HBM when D is already lane-dense (no extra pad
    # pass over the big tensor); only materialize a padded copy when the
    # feature axis actually needs lane padding.  The token axis is never
    # host-padded: the ragged last block is masked in-kernel.
    x_tok = x.reshape(T, D)
    if Dp != D:
        x_tok = jnp.pad(x_tok, ((0, 0), (0, Dp - D)))
    memT = jnp.pad(memory, ((0, Mp - M), (0, Dp - D))).T              # (Dp, Mp), tiny

    kernel = partial(_ltm_kernel,
                     learn_rate=float(learn_rate),
                     total_tokens=int(T),
                     token_tile=int(tile),
                     mask_tokens=bool(mask_tokens),
                     cast_mem=bool(cast_mem),
                     mm_dtype=mm_dtype)

    scratch_shapes = [
        pltpu.VMEM((Dp, m_tile), jnp.float32),   # accT  = sum x^T @ S
        pltpu.VMEM((1, m_tile), jnp.float32),    # csum  = sum colsum(S)
        pltpu.VMEM((1, m_tile), jnp.float32),    # ||mem||^2 (hoisted to ti==0)
    ]
    if cast_mem:
        scratch_shapes.append(pltpu.VMEM((Dp, m_tile), mm_dtype))     # hoisted cast

    vmem_limit = int(min(48 * 1024 * 1024,
                         max(32 * 1024 * 1024,
                             fixed_vmem + 3 * tile * Dp * x_item + (1 << 20))))

    outT = pl.pallas_call(
        kernel,
        out_shape=jax.ShapeDtypeStruct((Dp, Mp), memory.dtype),
        grid_spec=pltpu.PrefetchScalarGridSpec(
            num_scalar_prefetch=0,
            grid=(grid_m, grid_t),
            in_specs=[
                pl.BlockSpec((tile, Dp), lambda mi, ti: (ti, 0)),     # streamed tokens
                pl.BlockSpec((Dp, m_tile), lambda mi, ti: (0, mi)),   # resident memory blk
            ],
            out_specs=pl.BlockSpec((Dp, m_tile), lambda mi, ti: (0, mi)),
            scratch_shapes=scratch_shapes,
        ),
        compiler_params=pltpu.CompilerParams(
            # M blocks are independent -> "parallel" (uses the 2nd TC on v7x
            # when grid_m > 1); token axis is the sequential reduction.
            dimension_semantics=("parallel", "arbitrary"),
            vmem_limit_bytes=vmem_limit,
        ),
    )(x_tok, memT)

    return outT.T[:M, :D]


def _reference(x, memory, learn_rate=0.1):
    diff = x[:, :, None, :] - memory[None, None, :, :]
    surprise = jnp.sqrt(jnp.sum(diff * diff, axis=-1, keepdims=True))
    update = learn_rate * surprise * diff
    agg = jnp.mean(update, axis=(0, 1))
    return memory + agg


if __name__ == "__main__":
    learn_rate = 0.1
    key = jax.random.PRNGKey(0)

    # Module-consistent shapes: x is [batch, seq, input_dim]; memory zeros.
    B, S, D = 2, 8, 32
    M = 16
    x = jax.random.normal(key, (B, S, D), dtype=jnp.float32)
    memory = jnp.zeros((M, D), dtype=jnp.float32)

    out = jax.block_until_ready(long_term_memory_forward(x, memory, learn_rate=learn_rate))
    ref = _reference(x, memory, learn_rate=learn_rate)
    assert out.shape == (M, D)
    assert bool(jnp.allclose(out, ref, atol=5e-3, rtol=5e-3)), "mismatch vs reference"

    # Ragged shapes: nonzero memory, D/M padding, ragged (masked) token block.
    k1, k2 = jax.random.split(key)
    B2, S2, D2, M2 = 3, 5, 40, 12
    x2 = jax.random.normal(k1, (B2, S2, D2), dtype=jnp.float32)
    mem2 = 0.5 * jax.random.normal(k2, (M2, D2), dtype=jnp.float32)
    out2 = jax.block_until_ready(long_term_memory_forward(x2, mem2, learn_rate=learn_rate))
    ref2 = _reference(x2, mem2, learn_rate=learn_rate)
    assert out2.shape == (M2, D2)
    assert bool(jnp.allclose(out2, ref2, atol=5e-3, rtol=5e-3)), "mismatch vs reference (padded case)"

    # Lane-dense fast path: D % 128 == 0 -> x streamed with NO host-side pad;
    # T = 14 not a multiple of the tile -> exercises OOB-row masking in-kernel.
    k3, k4 = jax.random.split(k1)
    B3, S3, D3, M3 = 2, 7, 128, 8
    x3 = jax.random.normal(k3, (B3, S3, D3), dtype=jnp.float32)
    mem3 = 0.25 * jax.random.normal(k4, (M3, D3), dtype=jnp.float32)
    out3 = jax.block_until_ready(long_term_memory_forward(x3, mem3, learn_rate=learn_rate))
    ref3 = _reference(x3, mem3, learn_rate=learn_rate)
    assert out3.shape == (M3, D3)
    assert bool(jnp.allclose(out3, ref3, atol=5e-3, rtol=5e-3)), "mismatch vs reference (fast path)"

    print("KERNEL_OK")
</pallas_src>

<mosaic_0001>
module attributes {stable_mosaic.version = 11 : i64} {
  func.func @_ltm_kernel(%arg0: i32, %arg1: i32, %arg2: memref<16x128xf32, #tpu.memory_space<vmem>>, %arg3: memref<128x128xf32, #tpu.memory_space<vmem>>, %arg4: memref<128x128xf32, #tpu.memory_space<vmem>>, %arg5: memref<128x128xf32, #tpu.memory_space<vmem>>, %arg6: memref<1x128xf32, #tpu.memory_space<vmem>>, %arg7: memref<1x128xf32, #tpu.memory_space<vmem>>) attributes {dimension_semantics = [#tpu.dimension_semantics<parallel>, #tpu.dimension_semantics<arbitrary>], iteration_bounds = array<i64: 1, 1>, scalar_prefetch = 0 : i64, scratch_operands = 3 : i64, tpu.core_type = #tpu.core_type<tc>, window_params = [{transform_indices = @transform_0, window_bounds = array<i64: 16, 128>}, {transform_indices = @transform_1, window_bounds = array<i64: 128, 128>}, {transform_indices = @transform_2, window_bounds = array<i64: 128, 128>}]} {
    %c0 = arith.constant 0 : index
    %c0_0 = arith.constant 0 : index
    %0 = vector.load %arg3[%c0, %c0_0] : memref<128x128xf32, #tpu.memory_space<vmem>>, vector<128x128xf32>
    %c0_i32 = arith.constant 0 : i32
    %1 = arith.cmpi eq, %arg1, %c0_i32 : i32
    %2 = arith.extui %1 : i1 to i32
    %c0_i32_1 = arith.constant 0 : i32
    %3 = arith.cmpi ne, %2, %c0_i32_1 : i32
    scf.if %3 {
      %31 = arith.mulf %0, %0 : vector<128x128xf32>
      %cst_21 = arith.constant dense<0.000000e+00> : vector<128xf32>
      %32 = vector.multi_reduction <add>, %31, %cst_21 [0] : vector<128x128xf32> to vector<128xf32>
      %33 = vector.shape_cast %32 : vector<128xf32> to vector<1x128xf32>
      %c0_22 = arith.constant 0 : index
      %c0_23 = arith.constant 0 : index
      %34 = vector.load %arg7[%c0_22, %c0_23] : memref<1x128xf32, #tpu.memory_space<vmem>>, vector<1x128xf32>
      tpu.vector_store %arg7[%c0_22, %c0_23], %33 {strides = array<i32>} : memref<1x128xf32, #tpu.memory_space<vmem>>, vector<1x128xf32>,
      %cst_24 = arith.constant 0.000000e+00 : f32
      %35 = vector.broadcast %cst_24 : f32 to vector<128x128xf32>
      %c0_25 = arith.constant 0 : index
      %c0_26 = arith.constant 0 : index
      %36 = vector.load %arg5[%c0_25, %c0_26] : memref<128x128xf32, #tpu.memory_space<vmem>>, vector<128x128xf32>
      tpu.vector_store %arg5[%c0_25, %c0_26], %35 {strides = array<i32>} : memref<128x128xf32, #tpu.memory_space<vmem>>, vector<128x128xf32>,
      %cst_27 = arith.constant 0.000000e+00 : f32
      %37 = vector.broadcast %cst_27 : f32 to vector<1x128xf32>
      %c0_28 = arith.constant 0 : index
      %c0_29 = arith.constant 0 : index
      %38 = vector.load %arg6[%c0_28, %c0_29] : memref<1x128xf32, #tpu.memory_space<vmem>>, vector<1x128xf32>
      tpu.vector_store %arg6[%c0_28, %c0_29], %37 {strides = array<i32>} : memref<1x128xf32, #tpu.memory_space<vmem>>, vector<1x128xf32>,
    } else {
    }
    %c0_2 = arith.constant 0 : index
    %c0_3 = arith.constant 0 : index
    %4 = vector.load %arg2[%c0_2, %c0_3] : memref<16x128xf32, #tpu.memory_space<vmem>>, vector<16x128xf32>
    %cst = arith.constant dense<0.000000e+00> : vector<16x128xf32>
    %5 = tpu.matmul %4, %0, %cst {dimension_numbers = #tpu.dot_dimension_numbers<[1], [0], [0], [1], [0, 0, 1, 1], [], []>} : vector<16x128xf32>, vector<128x128xf32>, vector<16x128xf32> -> vector<16x128xf32>
    %6 = arith.mulf %4, %4 : vector<16x128xf32>
    %cst_4 = arith.constant dense<0.000000e+00> : vector<16xf32>
    %7 = vector.multi_reduction <add>, %6, %cst_4 [1] : vector<16x128xf32> to vector<16xf32>
    %8 = vector.shape_cast %7 : vector<16xf32> to vector<16x1xf32>
    %c0_5 = arith.constant 0 : index
    %c0_6 = arith.constant 0 : index
    %9 = vector.load %arg7[%c0_5, %c0_6] : memref<1x128xf32, #tpu.memory_space<vmem>>, vector<1x128xf32>
    %10 = vector.broadcast %8 : vector<16x1xf32> to vector<16x128xf32>
    %11 = vector.broadcast %9 : vector<1x128xf32> to vector<16x128xf32>
    %12 = arith.addf %10, %11 : vector<16x128xf32>
    %cst_7 = arith.constant 2.000000e+00 : f32
    %13 = vector.broadcast %cst_7 : f32 to vector<16x128xf32>
    %14 = arith.mulf %13, %5 : vector<16x128xf32>
    %15 = arith.subf %12, %14 : vector<16x128xf32>
    %cst_8 = arith.constant 0.000000e+00 : f32
    %16 = vector.broadcast %cst_8 : f32 to vector<16x128xf32>
    %17 = arith.maximumf %15, %16 : vector<16x128xf32>
    %18 = math.sqrt %17 : vector<16x128xf32>
    %c0_9 = arith.constant 0 : index
    %c0_10 = arith.constant 0 : index
    %19 = vector.load %arg5[%c0_9, %c0_10] : memref<128x128xf32, #tpu.memory_space<vmem>>, vector<128x128xf32>
    %cst_11 = arith.constant dense<0.000000e+00> : vector<128x128xf32>
    %20 = tpu.matmul %4, %18, %cst_11 {dimension_numbers = #tpu.dot_dimension_numbers<[0], [0], [1], [1], [0, 1, 1, 1], [], []>} : vector<16x128xf32>, vector<16x128xf32>, vector<128x128xf32> -> vector<128x128xf32>
    %21 = arith.addf %19, %20 : vector<128x128xf32>
    %c0_12 = arith.constant 0 : index
    %c0_13 = arith.constant 0 : index
    %22 = vector.load %arg5[%c0_12, %c0_13] : memref<128x128xf32, #tpu.memory_space<vmem>>, vector<128x128xf32>
    tpu.vector_store %arg5[%c0_12, %c0_13], %21 {strides = array<i32>} : memref<128x128xf32, #tpu.memory_space<vmem>>, vector<128x128xf32>,
    %c0_14 = arith.constant 0 : index
    %c0_15 = arith.constant 0 : index
    %23 = vector.load %arg6[%c0_14, %c0_15] : memref<1x128xf32, #tpu.memory_space<vmem>>, vector<1x128xf32>
    %cst_16 = arith.constant dense<0.000000e+00> : vector<128xf32>
    %24 = vector.multi_reduction <add>, %18, %cst_16 [0] : vector<16x128xf32> to vector<128xf32>
    %25 = vector.shape_cast %24 : vector<128xf32> to vector<1x128xf32>
    %26 = arith.addf %23, %25 : vector<1x128xf32>
    %c0_17 = arith.constant 0 : index
    %c0_18 = arith.constant 0 : index
    %27 = vector.load %arg6[%c0_17, %c0_18] : memref<1x128xf32, #tpu.memory_space<vmem>>, vector<1x128xf32>
    tpu.vector_store %arg6[%c0_17, %c0_18], %26 {strides = array<i32>} : memref<1x128xf32, #tpu.memory_space<vmem>>, vector<1x128xf32>,
    %c0_i32_19 = arith.constant 0 : i32
    %28 = arith.cmpi eq, %arg1, %c0_i32_19 : i32
    %29 = arith.extui %28 : i1 to i32
    %c0_i32_20 = arith.constant 0 : i32
    %30 = arith.cmpi ne, %29, %c0_i32_20 : i32
    scf.if %30 {
      %c0_21 = arith.constant 0 : index
      %c0_22 = arith.constant 0 : index
      %31 = vector.load %arg5[%c0_21, %c0_22] : memref<128x128xf32, #tpu.memory_space<vmem>>, vector<128x128xf32>
      %c0_23 = arith.constant 0 : index
      %c0_24 = arith.constant 0 : index
      %32 = vector.load %arg6[%c0_23, %c0_24] : memref<1x128xf32, #tpu.memory_space<vmem>>, vector<1x128xf32>
      %33 = vector.broadcast %32 : vector<1x128xf32> to vector<128x128xf32>
      %34 = arith.mulf %33, %0 : vector<128x128xf32>
      %35 = arith.subf %31, %34 : vector<128x128xf32>
      %cst_25 = arith.constant 6.250000e-03 : f32
      %36 = vector.broadcast %cst_25 : f32 to vector<128x128xf32>
      %37 = arith.mulf %36, %35 : vector<128x128xf32>
      %38 = arith.addf %0, %37 : vector<128x128xf32>
      %c0_26 = arith.constant 0 : index
      %c0_27 = arith.constant 0 : index
      %39 = vector.load %arg4[%c0_26, %c0_27] : memref<128x128xf32, #tpu.memory_space<vmem>>, vector<128x128xf32>
      tpu.vector_store %arg4[%c0_26, %c0_27], %38 {strides = array<i32>} : memref<128x128xf32, #tpu.memory_space<vmem>>, vector<128x128xf32>,
    } else {
    }
    return
  }
  func.func @transform_0(%arg0: i32, %arg1: i32) -> (i32, i32) {
    %c0_i32 = arith.constant 0 : i32
    %c0_i32_0 = arith.constant 0 : i32
    return %arg1, %c0_i32 : i32, i32
  }
  func.func @transform_1(%arg0: i32, %arg1: i32) -> (i32, i32) {
    %c0_i32 = arith.constant 0 : i32
    %c0_i32_0 = arith.constant 0 : i32
    return %c0_i32, %arg0 : i32, i32
  }
  func.func @transform_2(%arg0: i32, %arg1: i32) -> (i32, i32) {
    %c0_i32 = arith.constant 0 : i32
    %c0_i32_0 = arith.constant 0 : i32
    return %c0_i32, %arg0 : i32, i32
  }
}

</mosaic_0001>

<llo_original>
// kernel: tpu_custom_call.1
$region0: #{tpu_custom_call.1}
  #allocation0 [shape = 'u32[]', space=smem, size = 0x4, offset = 0x4, fixed_abs, tag = 'smem constant byte address 0x4 - core index']
  #allocation1 [shape = 'u32[144,128]{1,0:T(1,128)}', space=vmem, size = 0x12000, scoped, tag = 'internal scratch']
  #allocation2 [shape = 'f32[128,128]{1,0:T(8,128)}', space=vmem, size = 0x10000, scoped, tag = 'scratch operand']
  #allocation3 [shape = 'f32[1,128]{1,0:T(1,128)}', space=vmem, size = 0x200, scoped, tag = 'scratch operand']
  #allocation4 [shape = 'f32[1,128]{1,0:T(1,128)}', space=vmem, size = 0x200, scoped, tag = 'scratch operand']
  %s0 = inlined_call_operand.hbm [shape: f32[16,128], index: 0, kind: input, shape index: {}]
  %s1 = inlined_call_operand.hbm [shape: f32[128,128], index: 1, kind: input, shape index: {}]
  %s2 = inlined_call_operand.hbm [shape: f32[128,128], index: 2, kind: output, shape index: {}]
  %s3 = sld [smem:[#allocation0]]
  $region34: #{tpu_custom_call.1} parent=0
    _
  %s5 = ssub.s32 1, %s3
  %s6 = scalar_select 0, %s5, %s3
  $region1: #{tpu_custom_call.1} parent=0
    #allocation5 [shape = 'u8[8192]{0}', space=vmem, size = 0x2000, scoped, tag = 'input window, operand 0, single buffered']
    #allocation6 [shape = 's32[1]{0}', space=sflag, size = 0x4, scoped, tag = 'scoped memory for tpu_custom_call.1']
    #allocation7 [shape = 's32[1]{0}', space=sflag, size = 0x4, scoped, tag = 'scoped memory for tpu_custom_call.1']
    #allocation8 [shape = 'u8[65536]{0}', space=vmem, size = 0x10000, scoped, tag = 'input window, operand 1, single buffered']
    #allocation9 [shape = 's32[1]{0}', space=sflag, size = 0x4, scoped, tag = 'scoped memory for tpu_custom_call.1']
    #allocation10 [shape = 'u8[65536]{0}', space=vmem, size = 0x10000, scoped, tag = 'output window, operand 0, single buffered']
    %7 = vsyncpa [#allocation6], 0
    %8 = vsyncpa [#allocation9], 0
    %9 = vsyncpa [#allocation7], 0
    // Predicated region
    $region2: #{tpu_custom_call.1} parent=1 // pred_check
      _
    $region3: #{tpu_custom_call.1} parent=1 // pred_check_branch
      %11 = sbr.rel (0) target = $region5
    $region4: #{tpu_custom_call.1} parent=1 // pred_region
      %s13 = ssub.s32 256, 256
      %14 = vsyncadd [#allocation6], %s13
      %s15 = sshll.u32 [#allocation5], 4
      %s16 = int_to_ptr.vmem [resolvable:$true] %s15
      %21 = dma.hbm_to_vmem [thread:$0]  %s0, 256, %s16, [#allocation6], 128, 128, 8
    $region5: #{tpu_custom_call.1} parent=1 // pred_fallthru
      _
    // Predicated region
    $region6: #{tpu_custom_call.1} parent=1 // pred_check
      _
    $region7: #{tpu_custom_call.1} parent=1 // pred_check_branch
      %23 = sbr.rel (0) target = $region9
    $region8: #{tpu_custom_call.1} parent=1 // pred_region
      %s25 = ssub.s32 2048, 2048
      %26 = vsyncadd [#allocation9], %s25
      %s27 = sshll.u32 [#allocation8], 4
      %s28 = int_to_ptr.vmem [resolvable:$true] %s27
      %33 = dma.hbm_to_vmem [thread:$0]  %s1, 2048, %s28, [#allocation9], 128, 128, 8
    $region9: #{tpu_custom_call.1} parent=1 // pred_fallthru
      _
    // Predicated region
    $region10: #{tpu_custom_call.1} parent=1 // pred_check
      _
    $region11: #{tpu_custom_call.1} parent=1 // pred_check_branch
      %35 = sbr.rel (0) target = $region13
    $region12: #{tpu_custom_call.1} parent=1 // pred_region
      %36 = dma.done [#allocation6], 256
    $region13: #{tpu_custom_call.1} parent=1 // pred_fallthru
      _
    // Predicated region
    $region14: #{tpu_custom_call.1} parent=1 // pred_check
      _
    $region15: #{tpu_custom_call.1} parent=1 // pred_check_branch
      %38 = sbr.rel (0) target = $region17
    $region16: #{tpu_custom_call.1} parent=1 // pred_region
      %39 = dma.done [#allocation9], 2048
    $region17: #{tpu_custom_call.1} parent=1 // pred_fallthru
      _
    %v40 = vld [vmem:[#allocation8] sm:$0xff]
    %v41 = vld [vmem:[#allocation8 + $0x8] sm:$0xff]
    %v42 = vld [vmem:[#allocation8 + $0x10] sm:$0xff]
    %v43 = vld [vmem:[#allocation8 + $0x18] sm:$0xff]
    %v44 = vld [vmem:[#allocation8 + $0x20] sm:$0xff]
    %v45 = vld [vmem:[#allocation8 + $0x28] sm:$0xff]
    %v46 = vld [vmem:[#allocation8 + $0x30] sm:$0xff]
    %v47 = vld [vmem:[#allocation8 + $0x38] sm:$0xff]
    %v48 = vld [vmem:[#allocation8 + $0x40] sm:$0xff]
    %v49 = vld [vmem:[#allocation8 + $0x48] sm:$0xff]
    %v50 = vld [vmem:[#allocation8 + $0x50] sm:$0xff]
    %v51 = vld [vmem:[#allocation8 + $0x58] sm:$0xff]
    %v52 = vld [vmem:[#allocation8 + $0x60] sm:$0xff]
    %v53 = vld [vmem:[#allocation8 + $0x68] sm:$0xff]
    %v54 = vld [vmem:[#allocation8 + $0x70] sm:$0xff]
    %v55 = vld [vmem:[#allocation8 + $0x78] sm:$0xff]
    %p56 = scmp.eq.s32.totalorder 0, 0
    // Predicated region
    $region18: #{tpu_custom_call.1} parent=1 // pred_check
      %p57 = pneg %p56
    $region19: #{tpu_custom_call.1} parent=1 // pred_check_branch
      %59 = sbr.rel (%p57) target = $region21
    $region20: #{tpu_custom_call.1} parent=1 // pred_region
      %v60 = vmul.f32 %v40, %v40
      %v61 = vmul.f32 %v41, %v41
      %v62 = vmul.f32 %v42, %v42
      %v63 = vmul.f32 %v43, %v43
      %v64 = vmul.f32 %v44, %v44
      %v65 = vmul.f32 %v45, %v45
      %v66 = vmul.f32 %v46, %v46
      %v67 = vmul.f32 %v47, %v47
      %v68 = vmul.f32 %v48, %v48
      %v69 = vmul.f32 %v49, %v49
      %v70 = vmul.f32 %v50, %v50
      %v71 = vmul.f32 %v51, %v51
      %v72 = vmul.f32 %v52, %v52
      %v73 = vmul.f32 %v53, %v53
      %v74 = vmul.f32 %v54, %v54
      %v75 = vmul.f32 %v55, %v55
      %v76 = vadd.f32 %v60, %v61
      %v77 = vadd.f32 %v76, %v62
      %v78 = vadd.f32 %v77, %v63
      %v79 = vadd.f32 %v78, %v64
      %v80 = vadd.f32 %v79, %v65
      %v81 = vadd.f32 %v80, %v66
      %v82 = vadd.f32 %v81, %v67
      %v83 = vadd.f32 %v82, %v68
      %v84 = vadd.f32 %v83, %v69
      %v85 = vadd.f32 %v84, %v70
      %v86 = vadd.f32 %v85, %v71
      %v87 = vadd.f32 %v86, %v72
      %v88 = vadd.f32 %v87, %v73
      %v89 = vadd.f32 %v88, %v74
      %v90 = vadd.f32 %v89, %v75
      %v91 = vrot.slane %v90, 4
      %v92 = vadd.f32 %v90, %v91
      %v93 = vrot.slane %v92, 2
      %v94 = vadd.f32 %v92, %v93
      %v95 = vrot.slane %v94, 1
      %v96 = vadd.f32 %v94, %v95
      %97 = vst [vmem:[#allocation4] sm:$0x1] %v96
      %98 = vst [vmem:[#allocation2] sm:$0xff] 0.0
      %99 = vst [vmem:[#allocation2 + $0x8] sm:$0xff] 0.0
      %100 = vst [vmem:[#allocation2 + $0x10] sm:$0xff] 0.0
      %101 = vst [vmem:[#allocation2 + $0x18] sm:$0xff] 0.0
      %102 = vst [vmem:[#allocation2 + $0x20] sm:$0xff] 0.0
      %103 = vst [vmem:[#allocation2 + $0x28] sm:$0xff] 0.0
      %104 = vst [vmem:[#allocation2 + $0x30] sm:$0xff] 0.0
      %105 = vst [vmem:[#allocation2 + $0x38] sm:$0xff] 0.0
      %106 = vst [vmem:[#allocation2 + $0x40] sm:$0xff] 0.0
      %107 = vst [vmem:[#allocation2 + $0x48] sm:$0xff] 0.0
      %108 = vst [vmem:[#allocation2 + $0x50] sm:$0xff] 0.0
      %109 = vst [vmem:[#allocation2 + $0x58] sm:$0xff] 0.0
      %110 = vst [vmem:[#allocation2 + $0x60] sm:$0xff] 0.0
      %111 = vst [vmem:[#allocation2 + $0x68] sm:$0xff] 0.0
      %112 = vst [vmem:[#allocation2 + $0x70] sm:$0xff] 0.0
      %113 = vst [vmem:[#allocation2 + $0x78] sm:$0xff] 0.0
      %114 = vst [vmem:[#allocation3] sm:$0x1] 0.0
    $region21: #{tpu_custom_call.1} parent=1 // pred_fallthru
      _
    %v115 = vld [vmem:[#allocation5] sm:$0xff]
    %v116 = vld [vmem:[#allocation5 + $0x8] sm:$0xff]
    %117 = vmatprep.subr.mxu0 0.0
    %118 = vmatpush1.msra.mxu0 %v40
    %119 = vmatprep.subr.mxu0 0.0
    %120 = vmatpush1.msra.mxu0 %v41
    %121 = vmatprep.subr.mxu0 0.0
    %122 = vmatpush1.msra.mxu0 %v42
    %123 = vmatprep.subr.mxu0 0.0
    %124 = vmatpush1.msra.mxu0 %v43
    %125 = vmatprep.subr.mxu0 0.0
    %126 = vmatpush1.msra.mxu0 %v44
    %127 = vmatprep.subr.mxu0 0.0
    %128 = vmatpush1.msra.mxu0 %v45
    %129 = vmatprep.subr.mxu0 0.0
    %130 = vmatpush1.msra.mxu0 %v46
    %131 = vmatprep.subr.mxu0 0.0
    %132 = vmatpush1.msra.mxu0 %v47
    %133 = vmatprep.subr.mxu0 0.0
    %134 = vmatpush1.msra.mxu0 %v48
    %135 = vmatprep.subr.mxu0 0.0
    %136 = vmatpush1.msra.mxu0 %v49
    %137 = vmatprep.subr.mxu0 0.0
    %138 = vmatpush1.msra.mxu0 %v50
    %139 = vmatprep.subr.mxu0 0.0
    %140 = vmatpush1.msra.mxu0 %v51
    %141 = vmatprep.subr.mxu0 0.0
    %142 = vmatpush1.msra.mxu0 %v52
    %143 = vmatprep.subr.mxu0 0.0
    %144 = vmatpush1.msra.mxu0 %v53
    %145 = vmatprep.subr.mxu0 0.0
    %146 = vmatpush1.msra.mxu0 %v54
    %147 = vmatprep.subr.mxu0 0.0
    %148 = vmatpush1.msra.mxu0 %v55
    %149 = vmatprep.subr.mxu0 0.0
    %150 = vmatpush1.msra.mxu0 0.0
    %151 = vmatprep.subr.mxu0 0.0
    %152 = vmatpush1.msra.mxu0 0.0
    %153 = vmatprep.subr.mxu0 0.0
    %154 = vmatpush1.msra.mxu0 0.0
    %155 = vmatprep.subr.mxu0 0.0
    %156 = vmatpush1.msra.mxu0 0.0
    %157 = vmatprep.subr.mxu0 0.0
    %158 = vmatpush1.msra.mxu0 0.0
    %159 = vmatprep.subr.mxu0 0.0
    %160 = vmatpush1.msra.mxu0 0.0
    %161 = vmatprep.subr.mxu0 0.0
    %162 = vmatpush1.msra.mxu0 0.0
    %163 = vmatprep.subr.mxu0 0.0
    %164 = vmatpush1.msra.mxu0 0.0
    %165 = vmatprep.subr.mxu0 0.0
    %166 = vmatpush1.msra.mxu0 0.0
    %167 = vmatprep.subr.mxu0 0.0
    %168 = vmatpush1.msra.mxu0 0.0
    %169 = vmatprep.subr.mxu0 0.0
    %170 = vmatpush1.msra.mxu0 0.0
    %171 = vmatprep.subr.mxu0 0.0
    %172 = vmatpush1.msra.mxu0 0.0
    %173 = vmatprep.subr.mxu0 0.0
    %174 = vmatpush1.msra.mxu0 0.0
    %175 = vmatprep.subr.mxu0 0.0
    %176 = vmatpush1.msra.mxu0 0.0
    %177 = vmatprep.subr.mxu0 0.0
    %178 = vmatpush1.msra.mxu0 0.0
    %179 = vmatprep.subr.mxu0 0.0
    %180 = vmatpush1.msra.mxu0 0.0
    %181 = vmatprep.mubr.f32.mxu0 0.0
    %182 = vmatmul.mubr.f32.gmra.mrb[0].mxu0 %v115
    %v183 = vpop.f32.mrb[0].mxu0
    %v184 = vadd.f32 0.0, %v183
    %v185 = vpop.f32.mrb[0].mxu0
    %186 = vmatprep.mubr.f32.mxu0 0.0
    %187 = vmatmul.mubr.f32.gmra.mrb[0].mxu0 %v116
    %v188 = vpop.f32.mrb[0].mxu0
    %v189 = vadd.f32 0.0, %v188
    %v190 = vpop.f32.mrb[0].mxu0
    %191 = vdwg.mxu0
    %v192 = vmul.f32 %v115, %v115
    %v193 = vmul.f32 %v116, %v116
    %194 = vadd.xlane.f32.xlu0 %v192
    %v195 = vpop.xlane.xlu0 %194
    %196 = vadd.xlane.f32.xlu0 %v193
    %v197 = vpop.xlane.xlu0 %196
    %v198 = vld [vmem:[#allocation4] sm:$0x1]
    %v200 = vlaneseq
    %v201 = vshrl.u32 %v200, 7
    %v202 = vsub.s32 0, %v201
    %v203 = vrot.slane %v198, %v202
    %v205 = vadd.f32 %v195, %v203
    %v206 = vadd.f32 %v197, %v203
    %v207 = vmul.f32 %v184, 2.0
    %v208 = vmul.f32 %v189, 2.0
    %v209 = vsub.f32 %v205, %v207
    %v210 = vsub.f32 %v206, %v208
    %v211 = vmax.f32 %v209, 0.0
    %v212 = vmax.f32 %v210, 0.0
    %v213 = vrsqrt.pop %v211
    %v214 = vmul.f32 %v211, %v213
    %vm215 = vcmp.eq.f32.partialorder %v211, inf
    %v216 = vsel %vm215, %v211, %v214
    %vm217 = vcmp.eq.f32.partialorder %v211, 0.0
    %v218 = vand.u32 %v211, 2147483648
    %v219 = vsel %vm217, %v218, %v216
    %v220 = vrsqrt.pop %v212
    %v221 = vmul.f32 %v212, %v220
    %vm222 = vcmp.eq.f32.partialorder %v212, inf
    %v223 = vsel %vm222, %v212, %v221
    %vm224 = vcmp.eq.f32.partialorder %v212, 0.0
    %v225 = vand.u32 %v212, 2147483648
    %v226 = vsel %vm224, %v225, %v223
    %v227 = vld [vmem:[#allocation2] sm:$0xff]
    %v228 = vld [vmem:[#allocation2 + $0x8] sm:$0xff]
    %v229 = vld [vmem:[#allocation2 + $0x10] sm:$0xff]
    %v230 = vld [vmem:[#allocation2 + $0x18] sm:$0xff]
    %v231 = vld [vmem:[#allocation2 + $0x20] sm:$0xff]
    %v232 = vld [vmem:[#allocation2 + $0x28] sm:$0xff]
    %v233 = vld [vmem:[#allocation2 + $0x30] sm:$0xff]
    %v234 = vld [vmem:[#allocation2 + $0x38] sm:$0xff]
    %v235 = vld [vmem:[#allocation2 + $0x40] sm:$0xff]
    %v236 = vld [vmem:[#allocation2 + $0x48] sm:$0xff]
    %v237 = vld [vmem:[#allocation2 + $0x50] sm:$0xff]
    %v238 = vld [vmem:[#allocation2 + $0x58] sm:$0xff]
    %v239 = vld [vmem:[#allocation2 + $0x60] sm:$0xff]
    %v240 = vld [vmem:[#allocation2 + $0x68] sm:$0xff]
    %v241 = vld [vmem:[#allocation2 + $0x70] sm:$0xff]
    %v242 = vld [vmem:[#allocation2 + $0x78] sm:$0xff]
    %243 = vxpose.xlu0.b32.start [1/16] %v115, 128
    %244 = vxpose.xlu0.b32.cont [2/16] %v116, 128
    %245 = vxpose.xlu0.b32.cont [3/16] 0.0, 128
    %246 = vxpose.xlu0.b32.cont [4/16] 0.0, 128
    %247 = vxpose.xlu0.b32.cont [5/16] 0.0, 128
    %248 = vxpose.xlu0.b32.cont [6/16] 0.0, 128
    %249 = vxpose.xlu0.b32.cont [7/16] 0.0, 128
    %250 = vxpose.xlu0.b32.cont [8/16] 0.0, 128
    %251 = vxpose.xlu0.b32.cont [9/16] 0.0, 128
    %252 = vxpose.xlu0.b32.cont [10/16] 0.0, 128
    %253 = vxpose.xlu0.b32.cont [11/16] 0.0, 128
    %254 = vxpose.xlu0.b32.cont [12/16] 0.0, 128
    %255 = vxpose.xlu0.b32.cont [13/16] 0.0, 128
    %256 = vxpose.xlu0.b32.cont [14/16] 0.0, 128
    %257 = vxpose.xlu0.b32.cont [15/16] 0.0, 128
    %258 = vxpose.xlu0.b32.end [16/16] 0.0, 128
    %v259 = vpop.trf.xlu0
    %v260 = vpop.trf.xlu0
    %v261 = vpop.trf.xlu0
    %v262 = vpop.trf.xlu0
    %v263 = vpop.trf.xlu0
    %v264 = vpop.trf.xlu0
    %v265 = vpop.trf.xlu0
    %v266 = vpop.trf.xlu0
    %v267 = vpop.trf.xlu0
    %v268 = vpop.trf.xlu0
    %v269 = vpop.trf.xlu0
    %v270 = vpop.trf.xlu0
    %v271 = vpop.trf.xlu0
    %v272 = vpop.trf.xlu0
    %v273 = vpop.trf.xlu0
    %v274 = vpop.trf.xlu0
    %vm275 = vcmask 130048
    %v277 = vsel %vm275, %v259, 0
    %v280 = vsel %vm275, %v260, 0
    %v283 = vsel %vm275, %v261, 0
    %v286 = vsel %vm275, %v262, 0
    %v289 = vsel %vm275, %v263, 0
    %v292 = vsel %vm275, %v264, 0
    %v295 = vsel %vm275, %v265, 0
    %v298 = vsel %vm275, %v266, 0
    %v301 = vsel %vm275, %v267, 0
    %v304 = vsel %vm275, %v268, 0
    %v307 = vsel %vm275, %v269, 0
    %v310 = vsel %vm275, %v270, 0
    %v313 = vsel %vm275, %v271, 0
    %v316 = vsel %vm275, %v272, 0
    %v319 = vsel %vm275, %v273, 0
    %v322 = vsel %vm275, %v274, 0
    %324 = vmatprep.subr.mxu0 0.0
    %325 = vmatpush1.msra.mxu0 %v219
    %326 = vmatprep.subr.mxu0 0.0
    %327 = vmatpush1.msra.mxu0 %v226
    %328 = vmatprep.subr.mxu0 0.0
    %329 = vmatpush1.msra.mxu0 0.0
    %330 = vmatprep.subr.mxu0 0.0
    %331 = vmatpush1.msra.mxu0 0.0
    %332 = vmatprep.subr.mxu0 0.0
    %333 = vmatpush1.msra.mxu0 0.0
    %334 = vmatprep.subr.mxu0 0.0
    %335 = vmatpush1.msra.mxu0 0.0
    %336 = vmatprep.subr.mxu0 0.0
    %337 = vmatpush1.msra.mxu0 0.0
    %338 = vmatprep.subr.mxu0 0.0
    %339 = vmatpush1.msra.mxu0 0.0
    %340 = vmatprep.subr.mxu0 0.0
    %341 = vmatpush1.msra.mxu0 0.0
    %342 = vmatprep.subr.mxu0 0.0
    %343 = vmatpush1.msra.mxu0 0.0
    %344 = vmatprep.subr.mxu0 0.0
    %345 = vmatpush1.msra.mxu0 0.0
    %346 = vmatprep.subr.mxu0 0.0
    %347 = vmatpush1.msra.mxu0 0.0
    %348 = vmatprep.subr.mxu0 0.0
    %349 = vmatpush1.msra.mxu0 0.0
    %350 = vmatprep.subr.mxu0 0.0
    %351 = vmatpush1.msra.mxu0 0.0
    %352 = vmatprep.subr.mxu0 0.0
    %353 = vmatpush1.msra.mxu0 0.0
    %354 = vmatprep.subr.mxu0 0.0
    %355 = vmatpush1.msra.mxu0 0.0
    %356 = vmatprep.subr.mxu0 0.0
    %357 = vmatpush1.msra.mxu0 0.0
    %358 = vmatprep.subr.mxu0 0.0
    %359 = vmatpush1.msra.mxu0 0.0
    %360 = vmatprep.subr.mxu0 0.0
    %361 = vmatpush1.msra.mxu0 0.0
    %362 = vmatprep.subr.mxu0 0.0
    %363 = vmatpush1.msra.mxu0 0.0
    %364 = vmatprep.subr.mxu0 0.0
    %365 = vmatpush1.msra.mxu0 0.0
    %366 = vmatprep.subr.mxu0 0.0
    %367 = vmatpush1.msra.mxu0 0.0
    %368 = vmatprep.subr.mxu0 0.0
    %369 = vmatpush1.msra.mxu0 0.0
    %370 = vmatprep.subr.mxu0 0.0
    %371 = vmatpush1.msra.mxu0 0.0
    %372 = vmatprep.subr.mxu0 0.0
    %373 = vmatpush1.msra.mxu0 0.0
    %374 = vmatprep.subr.mxu0 0.0
    %375 = vmatpush1.msra.mxu0 0.0
    %376 = vmatprep.subr.mxu0 0.0
    %377 = vmatpush1.msra.mxu0 0.0
    %378 = vmatprep.subr.mxu0 0.0
    %379 = vmatpush1.msra.mxu0 0.0
    %380 = vmatprep.subr.mxu0 0.0
    %381 = vmatpush1.msra.mxu0 0.0
    %382 = vmatprep.subr.mxu0 0.0
    %383 = vmatpush1.msra.mxu0 0.0
    %384 = vmatprep.subr.mxu0 0.0
    %385 = vmatpush1.msra.mxu0 0.0
    %386 = vmatprep.subr.mxu0 0.0
    %387 = vmatpush1.msra.mxu0 0.0
    %388 = vmatprep.mubr.f32.mxu0 0.0
    %389 = vmatmul.mubr.f32.gmra.mrb[0].mxu0 %v277
    %v390 = vpop.f32.mrb[0].mxu0
    %v391 = vadd.f32 0.0, %v390
    %v392 = vpop.f32.mrb[0].mxu0
    %393 = vmatprep.mubr.f32.mxu0 0.0
    %394 = vmatmul.mubr.f32.gmra.mrb[0].mxu0 %v280
    %v395 = vpop.f32.mrb[0].mxu0
    %v396 = vadd.f32 0.0, %v395
    %v397 = vpop.f32.mrb[0].mxu0
    %398 = vmatprep.mubr.f32.mxu0 0.0
    %399 = vmatmul.mubr.f32.gmra.mrb[0].mxu0 %v283
    %v400 = vpop.f32.mrb[0].mxu0
    %v401 = vadd.f32 0.0, %v400
    %v402 = vpop.f32.mrb[0].mxu0
    %403 = vmatprep.mubr.f32.mxu0 0.0
    %404 = vmatmul.mubr.f32.gmra.mrb[0].mxu0 %v286
    %v405 = vpop.f32.mrb[0].mxu0
    %v406 = vadd.f32 0.0, %v405
    %v407 = vpop.f32.mrb[0].mxu0
    %408 = vmatprep.mubr.f32.mxu0 0.0
    %409 = vmatmul.mubr.f32.gmra.mrb[0].mxu0 %v289
    %v410 = vpop.f32.mrb[0].mxu0
    %v411 = vadd.f32 0.0, %v410
    %v412 = vpop.f32.mrb[0].mxu0
    %413 = vmatprep.mubr.f32.mxu0 0.0
    %414 = vmatmul.mubr.f32.gmra.mrb[0].mxu0 %v292
    %v415 = vpop.f32.mrb[0].mxu0
    %v416 = vadd.f32 0.0, %v415
    %v417 = vpop.f32.mrb[0].mxu0
    %418 = vmatprep.mubr.f32.mxu0 0.0
    %419 = vmatmul.mubr.f32.gmra.mrb[0].mxu0 %v295
    %v420 = vpop.f32.mrb[0].mxu0
    %v421 = vadd.f32 0.0, %v420
    %v422 = vpop.f32.mrb[0].mxu0
    %423 = vmatprep.mubr.f32.mxu0 0.0
    %424 = vmatmul.mubr.f32.gmra.mrb[0].mxu0 %v298
    %v425 = vpop.f32.mrb[0].mxu0
    %v426 = vadd.f32 0.0, %v425
    %v427 = vpop.f32.mrb[0].mxu0
    %428 = vmatprep.mubr.f32.mxu0 0.0
    %429 = vmatmul.mubr.f32.gmra.mrb[0].mxu0 %v301
    %v430 = vpop.f32.mrb[0].mxu0
    %v431 = vadd.f32 0.0, %v430
    %v432 = vpop.f32.mrb[0].mxu0
    %433 = vmatprep.mubr.f32.mxu0 0.0
    %434 = vmatmul.mubr.f32.gmra.mrb[0].mxu0 %v304
    %v435 = vpop.f32.mrb[0].mxu0
    %v436 = vadd.f32 0.0, %v435
    %v437 = vpop.f32.mrb[0].mxu0
    %438 = vmatprep.mubr.f32.mxu0 0.0
    %439 = vmatmul.mubr.f32.gmra.mrb[0].mxu0 %v307
    %v440 = vpop.f32.mrb[0].mxu0
    %v441 = vadd.f32 0.0, %v440
    %v442 = vpop.f32.mrb[0].mxu0
    %443 = vmatprep.mubr.f32.mxu0 0.0
    %444 = vmatmul.mubr.f32.gmra.mrb[0].mxu0 %v310
    %v445 = vpop.f32.mrb[0].mxu0
    %v446 = vadd.f32 0.0, %v445
    %v447 = vpop.f32.mrb[0].mxu0
    %448 = vmatprep.mubr.f32.mxu0 0.0
    %449 = vmatmul.mubr.f32.gmra.mrb[0].mxu0 %v313
    %v450 = vpop.f32.mrb[0].mxu0
    %v451 = vadd.f32 0.0, %v450
    %v452 = vpop.f32.mrb[0].mxu0
    %453 = vmatprep.mubr.f32.mxu0 0.0
    %454 = vmatmul.mubr.f32.gmra.mrb[0].mxu0 %v316
    %v455 = vpop.f32.mrb[0].mxu0
    %v456 = vadd.f32 0.0, %v455
    %v457 = vpop.f32.mrb[0].mxu0
    %458 = vmatprep.mubr.f32.mxu0 0.0
    %459 = vmatmul.mubr.f32.gmra.mrb[0].mxu0 %v319
    %v460 = vpop.f32.mrb[0].mxu0
    %v461 = vadd.f32 0.0, %v460
    %v462 = vpop.f32.mrb[0].mxu0
    %463 = vmatprep.mubr.f32.mxu0 0.0
    %464 = vmatmul.mubr.f32.gmra.mrb[0].mxu0 %v322
    %v465 = vpop.f32.mrb[0].mxu0
    %v466 = vadd.f32 0.0, %v465
    %v467 = vpop.f32.mrb[0].mxu0
    %468 = vdwg.mxu0
    %v469 = vadd.f32 %v227, %v391
    %v470 = vadd.f32 %v228, %v396
    %v471 = vadd.f32 %v229, %v401
    %v472 = vadd.f32 %v230, %v406
    %v473 = vadd.f32 %v231, %v411
    %v474 = vadd.f32 %v232, %v416
    %v475 = vadd.f32 %v233, %v421
    %v476 = vadd.f32 %v234, %v426
    %v477 = vadd.f32 %v235, %v431
    %v478 = vadd.f32 %v236, %v436
    %v479 = vadd.f32 %v237, %v441
    %v480 = vadd.f32 %v238, %v446
    %v481 = vadd.f32 %v239, %v451
    %v482 = vadd.f32 %v240, %v456
    %v483 = vadd.f32 %v241, %v461
    %v484 = vadd.f32 %v242, %v466
    %485 = vst [vmem:[#allocation2] sm:$0xff] %v469
    %486 = vst [vmem:[#allocation2 + $0x8] sm:$0xff] %v470
    %487 = vst [vmem:[#allocation2 + $0x10] sm:$0xff] %v471
    %488 = vst [vmem:[#allocation2 + $0x18] sm:$0xff] %v472
    %489 = vst [vmem:[#allocation2 + $0x20] sm:$0xff] %v473
    %490 = vst [vmem:[#allocation2 + $0x28] sm:$0xff] %v474
    %491 = vst [vmem:[#allocation2 + $0x30] sm:$0xff] %v475
    %492 = vst [vmem:[#allocation2 + $0x38] sm:$0xff] %v476
    %493 = vst [vmem:[#allocation2 + $0x40] sm:$0xff] %v477
    %494 = vst [vmem:[#allocation2 + $0x48] sm:$0xff] %v478
    %495 = vst [vmem:[#allocation2 + $0x50] sm:$0xff] %v479
    %496 = vst [vmem:[#allocation2 + $0x58] sm:$0xff] %v480
    %497 = vst [vmem:[#allocation2 + $0x60] sm:$0xff] %v481
    %498 = vst [vmem:[#allocation2 + $0x68] sm:$0xff] %v482
    %499 = vst [vmem:[#allocation2 + $0x70] sm:$0xff] %v483
    %500 = vst [vmem:[#allocation2 + $0x78] sm:$0xff] %v484
    %v501 = vld [vmem:[#allocation3] sm:$0x1]
    %v502 = vadd.f32 %v219, %v226
    %v503 = vrot.slane %v502, 4
    %v504 = vadd.f32 %v502, %v503
    %v505 = vrot.slane %v504, 2
    %v506 = vadd.f32 %v504, %v505
    %v507 = vrot.slane %v506, 1
    %v508 = vadd.f32 %v506, %v507
    %v509 = vadd.f32 %v501, %v508
    %510 = vst [vmem:[#allocation3] sm:$0x1] %v509
    // Predicated region
    $region22: #{tpu_custom_call.1} parent=1 // pred_check
      %p511 = pneg %p56
    $region23: #{tpu_custom_call.1} parent=1 // pred_check_branch
      %513 = sbr.rel (%p511) target = $region25
    $region24: #{tpu_custom_call.1} parent=1 // pred_region
      %v514 = vld [vmem:[#allocation2] sm:$0xff]
      %v515 = vld [vmem:[#allocation2 + $0x8] sm:$0xff]
      %v516 = vld [vmem:[#allocation2 + $0x10] sm:$0xff]
      %v517 = vld [vmem:[#allocation2 + $0x18] sm:$0xff]
      %v518 = vld [vmem:[#allocation2 + $0x20] sm:$0xff]
      %v519 = vld [vmem:[#allocation2 + $0x28] sm:$0xff]
      %v520 = vld [vmem:[#allocation2 + $0x30] sm:$0xff]
      %v521 = vld [vmem:[#allocation2 + $0x38] sm:$0xff]
      %v522 = vld [vmem:[#allocation2 + $0x40] sm:$0xff]
      %v523 = vld [vmem:[#allocation2 + $0x48] sm:$0xff]
      %v524 = vld [vmem:[#allocation2 + $0x50] sm:$0xff]
      %v525 = vld [vmem:[#allocation2 + $0x58] sm:$0xff]
      %v526 = vld [vmem:[#allocation2 + $0x60] sm:$0xff]
      %v527 = vld [vmem:[#allocation2 + $0x68] sm:$0xff]
      %v528 = vld [vmem:[#allocation2 + $0x70] sm:$0xff]
      %v529 = vld [vmem:[#allocation2 + $0x78] sm:$0xff]
      %v530 = vld [vmem:[#allocation3] sm:$0x1]
      %v532 = vlaneseq
      %v533 = vshrl.u32 %v532, 7
      %v534 = vsub.s32 0, %v533
      %v535 = vrot.slane %v530, %v534
      %v537 = vmul.f32 %v535, %v40
      %v538 = vmul.f32 %v535, %v41
      %v539 = vmul.f32 %v535, %v42
      %v540 = vmul.f32 %v535, %v43
      %v541 = vmul.f32 %v535, %v44
      %v542 = vmul.f32 %v535, %v45
      %v543 = vmul.f32 %v535, %v46
      %v544 = vmul.f32 %v535, %v47
      %v545 = vmul.f32 %v535, %v48
      %v546 = vmul.f32 %v535, %v49
      %v547 = vmul.f32 %v535, %v50
      %v548 = vmul.f32 %v535, %v51
      %v549 = vmul.f32 %v535, %v52
      %v550 = vmul.f32 %v535, %v53
      %v551 = vmul.f32 %v535, %v54
      %v552 = vmul.f32 %v535, %v55
      %v553 = vsub.f32 %v514, %v537
      %v554 = vsub.f32 %v515, %v538
      %v555 = vsub.f32 %v516, %v539
      %v556 = vsub.f32 %v517, %v540
      %v557 = vsub.f32 %v518, %v541
      %v558 = vsub.f32 %v519, %v542
      %v559 = vsub.f32 %v520, %v543
      %v560 = vsub.f32 %v521, %v544
      %v561 = vsub.f32 %v522, %v545
      %v562 = vsub.f32 %v523, %v546
      %v563 = vsub.f32 %v524, %v547
      %v564 = vsub.f32 %v525, %v548
      %v565 = vsub.f32 %v526, %v549
      %v566 = vsub.f32 %v527, %v550
      %v567 = vsub.f32 %v528, %v551
      %v568 = vsub.f32 %v529, %v552
      %v569 = vmul.f32 %v553, 0.00625
      %v570 = vmul.f32 %v554, 0.00625
      %v571 = vmul.f32 %v555, 0.00625
      %v572 = vmul.f32 %v556, 0.00625
      %v573 = vmul.f32 %v557, 0.00625
      %v574 = vmul.f32 %v558, 0.00625
      %v575 = vmul.f32 %v559, 0.00625
      %v576 = vmul.f32 %v560, 0.00625
      %v577 = vmul.f32 %v561, 0.00625
      %v578 = vmul.f32 %v562, 0.00625
      %v579 = vmul.f32 %v563, 0.00625
      %v580 = vmul.f32 %v564, 0.00625
      %v581 = vmul.f32 %v565, 0.00625
      %v582 = vmul.f32 %v566, 0.00625
      %v583 = vmul.f32 %v567, 0.00625
      %v584 = vmul.f32 %v568, 0.00625
      %v585 = vadd.f32 %v40, %v569
      %v586 = vadd.f32 %v41, %v570
      %v587 = vadd.f32 %v42, %v571
      %v588 = vadd.f32 %v43, %v572
      %v589 = vadd.f32 %v44, %v573
      %v590 = vadd.f32 %v45, %v574
      %v591 = vadd.f32 %v46, %v575
      %v592 = vadd.f32 %v47, %v576
      %v593 = vadd.f32 %v48, %v577
      %v594 = vadd.f32 %v49, %v578
      %v595 = vadd.f32 %v50, %v579
      %v596 = vadd.f32 %v51, %v580
      %v597 = vadd.f32 %v52, %v581
      %v598 = vadd.f32 %v53, %v582
      %v599 = vadd.f32 %v54, %v583
      %v600 = vadd.f32 %v55, %v584
      %601 = vst [vmem:[#allocation10] sm:$0xff] %v585
      %602 = vst [vmem:[#allocation10 + $0x8] sm:$0xff] %v586
      %603 = vst [vmem:[#allocation10 + $0x10] sm:$0xff] %v587
      %604 = vst [vmem:[#allocation10 + $0x18] sm:$0xff] %v588
      %605 = vst [vmem:[#allocation10 + $0x20] sm:$0xff] %v589
      %606 = vst [vmem:[#allocation10 + $0x28] sm:$0xff] %v590
      %607 = vst [vmem:[#allocation10 + $0x30] sm:$0xff] %v591
      %608 = vst [vmem:[#allocation10 + $0x38] sm:$0xff] %v592
      %609 = vst [vmem:[#allocation10 + $0x40] sm:$0xff] %v593
      %610 = vst [vmem:[#allocation10 + $0x48] sm:$0xff] %v594
      %611 = vst [vmem:[#allocation10 + $0x50] sm:$0xff] %v595
      %612 = vst [vmem:[#allocation10 + $0x58] sm:$0xff] %v596
      %613 = vst [vmem:[#allocation10 + $0x60] sm:$0xff] %v597
      %614 = vst [vmem:[#allocation10 + $0x68] sm:$0xff] %v598
      %615 = vst [vmem:[#allocation10 + $0x70] sm:$0xff] %v599
      %616 = vst [vmem:[#allocation10 + $0x78] sm:$0xff] %v600
    $region25: #{tpu_custom_call.1} parent=1 // pred_fallthru
      _
    // Predicated region
    $region26: #{tpu_custom_call.1} parent=1 // pred_check
      _
    $region27: #{tpu_custom_call.1} parent=1 // pred_check_branch
      %618 = sbr.rel (0) target = $region29
    $region28: #{tpu_custom_call.1} parent=1 // pred_region
      %s620 = ssub.s32 2048, 2048
      %621 = vsyncadd [#allocation7], %s620
      %s622 = sshll.u32 [#allocation10], 4
      %s623 = int_to_ptr.vmem [resolvable:$true] %s622
      %628 = dma.vmem_to_hbm [thread:$0]  %s623, 2048, %s2, [#allocation7], 128, 128, 8
    $region29: #{tpu_custom_call.1} parent=1 // pred_fallthru
      _
    // Predicated region
    $region30: #{tpu_custom_call.1} parent=1 // pred_check
      _
    $region31: #{tpu_custom_call.1} parent=1 // pred_check_branch
      %630 = sbr.rel (0) target = $region33
    $region32: #{tpu_custom_call.1} parent=1 // pred_region
      %631 = dma.done [#allocation7], 2048
    $region33: #{tpu_custom_call.1} parent=1 // pred_fallthru
      _
    %632 = vsyncpa [#allocation6], 1
    %633 = vsyncpa [#allocation9], 1
    %634 = vsyncpa [#allocation7], 1

</llo_original>
